<compile_context>
chip_gen: v5e
topology: v5e:2x2
jax: 0.10.0
libtpu: 0.0.40
codegen_flags: <defaults>
</compile_context>

<pallas_src>
import math

import jax
import jax.numpy as jnp
from jax.experimental import pallas as pl
from jax.experimental.pallas import tpu as pltpu


_SQRT_2_OVER_PI = math.sqrt(2.0 / math.pi)
_COEF = 0.44715                      # module's literal coefficient
_C3 = _SQRT_2_OVER_PI * _COEF        # folded at trace time: saves one vmul/elem


def gelu_kernel(x_ref, o_ref):
    x = x_ref[...].astype(jnp.float32)
    x2 = x * x
    # inner = sqrt(2/pi) * (x + 0.44715*x^3) == x * (c + (c*0.44715)*x^2)
    inner = x * (jnp.float32(_SQRT_2_OVER_PI) + jnp.float32(_C3) * x2)
    y = jnp.float32(0.5) * x * (jnp.float32(1.0) + jnp.tanh(inner))
    o_ref[...] = y.astype(o_ref.dtype)


def gelu(x):
    """Applies the module's tanh-GELU elementwise to an array of any shape."""
    orig_shape = x.shape
    dtype = x.dtype
    n = int(math.prod(orig_shape)) if orig_shape else 1
    itemsize = jnp.dtype(dtype).itemsize
    # sublane granularity per dtype width (min tile second-to-last dim)
    sub = 32 if itemsize == 1 else (16 if itemsize == 2 else 8)

    TILE_BUDGET = 3 * 1024 * 1024    # per-block bytes (x4 when double-buffered in+out)
    MIN_TILE = 1 * 1024 * 1024       # keep tiles >= ~1 MiB (roofline knee)
    W_CAP = 8192                     # widest slab width we search for

    # ---- choose a lane-dense slab width W: largest multiple-of-128 divisor ----
    W = None
    if n % 128 == 0:
        cap = min(W_CAP, n)
        for cand in range((cap // 128) * 128, 0, -128):
            if n % cand == 0:
                W = cand
                break
    if W is None:
        # No multiple-of-128 divisor: keep natural last dim (masked edge stores).
        W = orig_shape[-1] if len(orig_shape) >= 1 else 1
    rows = n // W
    slab = x.reshape(rows, W)

    # ---- choose block width (only the odd fallback ever needs W tiling) ----
    row_factor = max(1, min(sub, rows))
    if W * itemsize * row_factor <= TILE_BUDGET:
        block_w = W                                     # full-extent lane dim
    else:
        block_w = max(128, (TILE_BUDGET // (row_factor * itemsize)) // 128 * 128)
        if W >= 128:
            block_w = min(block_w, max(128, (W // 128) * 128))
        if rows <= sub and W >= 4 * 128:
            # Row axis cannot supply grid blocks: aim for >=4 blocks along W,
            # keeping each block >= ~1 MiB.
            cap4 = max(128, ((W // 4) // 128) * 128)
            min_bw = max(128, (MIN_TILE // (row_factor * itemsize)) // 128 * 128)
            block_w = min(block_w, max(cap4, min(min_bw, block_w)))
    grid_w = pl.cdiv(W, block_w)

    # ---- choose block rows ----
    bytes_per_row_block = block_w * itemsize
    if rows <= sub:
        block_rows = rows                               # single full-extent block
    else:
        max_br_budget = max(sub, (TILE_BUDGET // bytes_per_row_block) // sub * sub)
        max_br_rows = max(sub, (rows // sub) * sub)
        block_rows = min(max_br_budget, max_br_rows)
        # Prefer >= 4 total grid blocks (>= 2 per v7x TC) when rows allow,
        # keeping tiles >= ~1 MiB.
        target = max(1, 4 // grid_w) if grid_w < 4 else 1
        if target > 1 and rows >= target * sub:
            cap_t = max(sub, ((rows // target) // sub) * sub)
            min_br = -(-MIN_TILE // bytes_per_row_block)
            min_br = max(sub, -(-min_br // sub) * sub)
            min_br = min(min_br, block_rows)
            block_rows = min(block_rows, max(cap_t, min_br))
    grid_r = pl.cdiv(rows, block_rows)

    out = pl.pallas_call(
        gelu_kernel,
        out_shape=jax.ShapeDtypeStruct((rows, W), dtype),
        grid=(grid_r, grid_w),
        in_specs=[pl.BlockSpec((block_rows, block_w), lambda i, j: (i, j))],
        out_specs=pl.BlockSpec((block_rows, block_w), lambda i, j: (i, j)),
        compiler_params=pltpu.CompilerParams(
            dimension_semantics=("parallel", "parallel"),
            vmem_limit_bytes=32 << 20,
        ),
    )(slab)

    return out.reshape(orig_shape)


def gelu_ref(x):
    xf = x.astype(jnp.float32)
    c = jnp.float32(_SQRT_2_OVER_PI)
    y = 0.5 * xf * (1.0 + jnp.tanh(c * (xf + jnp.float32(_COEF) * xf ** 3)))
    return y.astype(x.dtype)


if __name__ == "__main__":
    key = jax.random.PRNGKey(0)

    # Small shape matching the module's typical use (seq, hidden).
    seq, hidden = 8, 32
    x_small = jax.random.normal(key, (seq, hidden), dtype=jnp.float32)
    out_small = jax.block_until_ready(gelu(x_small))
    ref_small = gelu_ref(x_small)
    assert out_small.shape == x_small.shape and out_small.dtype == x_small.dtype
    assert jnp.allclose(out_small, ref_small, atol=1e-5, rtol=1e-5)

    # Larger shape exercising the lane-dense multi-of-128 slab path.
    x_big = jax.random.normal(jax.random.PRNGKey(1), (256, 768), dtype=jnp.float32)
    out_big = jax.block_until_ready(gelu(x_big))
    ref_big = gelu_ref(x_big)
    assert out_big.shape == x_big.shape and out_big.dtype == x_big.dtype
    assert jnp.allclose(out_big, ref_big, atol=1e-5, rtol=1e-5)

    # Odd shape exercising the non-128 fallback (full-extent / masked stores).
    x_odd = jax.random.normal(jax.random.PRNGKey(2), (3, 50), dtype=jnp.float32)
    out_odd = jax.block_until_ready(gelu(x_odd))
    ref_odd = gelu_ref(x_odd)
    assert out_odd.shape == x_odd.shape and out_odd.dtype == x_odd.dtype
    assert jnp.allclose(out_odd, ref_odd, atol=1e-5, rtol=1e-5)

    print("KERNEL_OK")
</pallas_src>

<mosaic_0001>
module attributes {stable_mosaic.version = 11 : i64} {
  func.func @gelu_kernel(%arg0: i32, %arg1: i32, %arg2: memref<1x256xf32, #tpu.memory_space<vmem>>, %arg3: memref<1x256xf32, #tpu.memory_space<vmem>>) attributes {dimension_semantics = [#tpu.dimension_semantics<parallel>, #tpu.dimension_semantics<parallel>], iteration_bounds = array<i64: 1, 1>, scalar_prefetch = 0 : i64, scratch_operands = 0 : i64, tpu.core_type = #tpu.core_type<tc>, window_params = [{transform_indices = @transform_0, window_bounds = array<i64: 1, 256>}, {transform_indices = @transform_1, window_bounds = array<i64: 1, 256>}]} {
    %c0 = arith.constant 0 : index
    %c0_0 = arith.constant 0 : index
    %0 = vector.load %arg2[%c0, %c0_0] : memref<1x256xf32, #tpu.memory_space<vmem>>, vector<1x256xf32>
    %1 = arith.mulf %0, %0 : vector<1x256xf32>
    %cst = arith.constant 0.356774092 : f32
    %2 = vector.broadcast %cst : f32 to vector<1x256xf32>
    %3 = arith.mulf %2, %1 : vector<1x256xf32>
    %cst_1 = arith.constant 0.797884583 : f32
    %4 = vector.broadcast %cst_1 : f32 to vector<1x256xf32>
    %5 = arith.addf %4, %3 : vector<1x256xf32>
    %6 = arith.mulf %0, %5 : vector<1x256xf32>
    %cst_2 = arith.constant 5.000000e-01 : f32
    %7 = vector.broadcast %cst_2 : f32 to vector<1x256xf32>
    %8 = arith.mulf %7, %0 : vector<1x256xf32>
    %9 = math.tanh %6 : vector<1x256xf32>
    %cst_3 = arith.constant 1.000000e+00 : f32
    %10 = vector.broadcast %cst_3 : f32 to vector<1x256xf32>
    %11 = arith.addf %10, %9 : vector<1x256xf32>
    %12 = arith.mulf %8, %11 : vector<1x256xf32>
    %c0_4 = arith.constant 0 : index
    %c0_5 = arith.constant 0 : index
    %13 = vector.load %arg3[%c0_4, %c0_5] : memref<1x256xf32, #tpu.memory_space<vmem>>, vector<1x256xf32>
    tpu.vector_store %arg3[%c0_4, %c0_5], %12 {strides = array<i32>} : memref<1x256xf32, #tpu.memory_space<vmem>>, vector<1x256xf32>,
    return
  }
  func.func @transform_0(%arg0: i32, %arg1: i32) -> (i32, i32) {
    %c0_i32 = arith.constant 0 : i32
    return %arg0, %arg1 : i32, i32
  }
  func.func @transform_1(%arg0: i32, %arg1: i32) -> (i32, i32) {
    %c0_i32 = arith.constant 0 : i32
    return %arg0, %arg1 : i32, i32
  }
}

</mosaic_0001>

<llo_original>
// kernel: tpu_custom_call.1
$region0: #{tpu_custom_call.1}
  #allocation0 [shape = 'u32[]', space=smem, size = 0x4, offset = 0x4, fixed_abs, tag = 'smem constant byte address 0x4 - core index']
  #allocation1 [shape = 'u32[72,128]{1,0:T(1,128)}', space=vmem, size = 0x9000, scoped, tag = 'internal scratch']
  %s0 = inlined_call_operand.hbm [shape: f32[1,256], index: 0, kind: input, shape index: {}]
  %s1 = inlined_call_operand.hbm [shape: f32[1,256], index: 1, kind: output, shape index: {}]
  %s2 = sld [smem:[#allocation0]]
  $region18: #{tpu_custom_call.1} parent=0
    _
  %s4 = ssub.s32 1, %s2
  %s5 = scalar_select 0, %s4, %s2
  $region1: #{tpu_custom_call.1} parent=0
    #allocation2 [shape = 'u8[1024]{0}', space=vmem, size = 0x400, scoped, tag = 'input window, operand 0, single buffered']
    #allocation3 [shape = 's32[1]{0}', space=sflag, size = 0x4, scoped, tag = 'scoped memory for tpu_custom_call.1']
    #allocation4 [shape = 's32[1]{0}', space=sflag, size = 0x4, scoped, tag = 'scoped memory for tpu_custom_call.1']
    #allocation5 [shape = 'u8[1024]{0}', space=vmem, size = 0x400, scoped, tag = 'output window, operand 0, single buffered']
    %6 = vsyncpa [#allocation3], 0
    %7 = vsyncpa [#allocation4], 0
    // Predicated region
    $region2: #{tpu_custom_call.1} parent=1 // pred_check
      _
    $region3: #{tpu_custom_call.1} parent=1 // pred_check_branch
      %9 = sbr.rel (0) target = $region5
    $region4: #{tpu_custom_call.1} parent=1 // pred_region
      %11 = vsyncadd [#allocation3], 0
      %s13 = sshll.u32 %s0, 4
      %s14 = int_to_ptr.hbm [resolvable:$true] %s13
      %s15 = sshll.u32 [#allocation2], 4
      %s16 = int_to_ptr.vmem [resolvable:$true] %s15
      %18 = dma.hbm_to_vmem [thread:$0]  %s14, 32, %s16, [#allocation3]
    $region5: #{tpu_custom_call.1} parent=1 // pred_fallthru
      _
    // Predicated region
    $region6: #{tpu_custom_call.1} parent=1 // pred_check
      _
    $region7: #{tpu_custom_call.1} parent=1 // pred_check_branch
      %20 = sbr.rel (0) target = $region9
    $region8: #{tpu_custom_call.1} parent=1 // pred_region
      %22 = dma.done [#allocation3], 32
    $region9: #{tpu_custom_call.1} parent=1 // pred_fallthru
      _
    %v23 = vld [vmem:[#allocation2] sm:$0x3]
    %v24 = vmul.f32 %v23, %v23
    %v25 = vmul.f32 %v24, 0.3567741
    %v26 = vadd.f32 %v25, 0.7978846
    %v27 = vmul.f32 %v23, %v26
    %v28 = vmul.f32 %v23, 0.5
    %v29 = vtanh.pop %v27
    %v30 = vadd.f32 %v29, 1.0
    %v31 = vmul.f32 %v28, %v30
    %v32 = vlaneseq
    %vm33 = vcmp.ge.s32.totalorder %v32, 0
    %vm34 = vcmp.lt.s32.totalorder %v32, 256
    %vm35 = vmand %vm33, %vm34
    %36 = vst.msk [vmem:[#allocation5] sm:$0x3] %vm35, %v31
    // Predicated region
    $region10: #{tpu_custom_call.1} parent=1 // pred_check
      _
    $region11: #{tpu_custom_call.1} parent=1 // pred_check_branch
      %38 = sbr.rel (0) target = $region13
    $region12: #{tpu_custom_call.1} parent=1 // pred_region
      %40 = vsyncadd [#allocation4], 0
      %s42 = sshll.u32 [#allocation5], 4
      %s43 = int_to_ptr.vmem [resolvable:$true] %s42
      %s44 = sshll.u32 %s1, 4
      %s45 = int_to_ptr.hbm [resolvable:$true] %s44
      %47 = dma.vmem_to_hbm [thread:$0]  %s43, 32, %s45, [#allocation4]
    $region13: #{tpu_custom_call.1} parent=1 // pred_fallthru
      _
    // Predicated region
    $region14: #{tpu_custom_call.1} parent=1 // pred_check
      _
    $region15: #{tpu_custom_call.1} parent=1 // pred_check_branch
      %49 = sbr.rel (0) target = $region17
    $region16: #{tpu_custom_call.1} parent=1 // pred_region
      %51 = dma.done [#allocation4], 32
    $region17: #{tpu_custom_call.1} parent=1 // pred_fallthru
      _
    %52 = vsyncpa [#allocation3], 1
    %53 = vsyncpa [#allocation4], 1

</llo_original>
